<compile_context>
chip_gen: v6e
topology: v6e:2x2x1
jax: 0.10.0
libtpu: 0.0.40
codegen_flags: <defaults>
</compile_context>

<pallas_src>
import functools
import math

import numpy as np
import jax
import jax.numpy as jnp
from jax.experimental import pallas as pl
from jax.experimental.pallas import tpu as pltpu

# Nucleotide -> integer code, matching the autosome convention used by n2id.
CODES = {"A": 0, "C": 1, "G": 2, "T": 3, "N": 4}


def n2id(n: str) -> int:
    return CODES[n.upper()]


_PAD_CODE = 4            # 'N' -> all-zero one-hot column, sliced off afterwards
_LANE = 128
_TILE_MAX = 64 * 1024    # lanes per block: 4*64K*4B = 1 MiB output per buffer

# 256-entry byte -> code lookup table (case-insensitive); 255 marks invalid.
_LUT = np.full(256, 255, dtype=np.uint8)
for _ch, _v in CODES.items():
    _LUT[ord(_ch)] = _v
    _LUT[ord(_ch.lower())] = _v


def _seq_to_codes(seq: str) -> np.ndarray:
    """Host-side: string -> int8 code vector (no per-character Python loop)."""
    raw = np.frombuffer(seq.encode("ascii"), dtype=np.uint8)
    codes = _LUT[raw]
    if codes.size and int(codes.max()) == 255:
        bad = chr(int(raw[int(np.argmax(codes == 255))]))
        raise KeyError(bad)  # same failure mode as n2id() on unknown chars
    return codes.astype(np.int8)


def _bucket_len(L: int) -> int:
    """Round L up to a power of two >= 128 (limits recompiles per length)."""
    return max(_LANE, 1 << max(0, math.ceil(math.log2(max(L, 1)))))


def _seq2tensor_kernel(code_ref, out_ref):
    # code_ref: (1, TL) int8 in VMEM;  out_ref: (4, TL) float32 in VMEM.
    codes = code_ref[...].astype(jnp.int32)                  # (1, TL)
    rows = jax.lax.broadcasted_iota(jnp.int32, (4, 1), 0)    # tiny (4, 1)
    # One-hot over classes 0..3; class 4 ('N' / padding) matches no row,
    # exactly like one_hot(..., 5)[:, :4].T in the reference.
    out_ref[...] = (rows == codes).astype(jnp.float32)


@functools.lru_cache(maxsize=None)
def _build_call(L_pad: int, tile: int):
    assert L_pad % tile == 0 and tile % _LANE == 0
    call = pl.pallas_call(
        _seq2tensor_kernel,
        out_shape=jax.ShapeDtypeStruct((4, L_pad), jnp.float32),
        grid=(L_pad // tile,),
        in_specs=[pl.BlockSpec((1, tile), lambda i: (0, i))],
        out_specs=pl.BlockSpec((4, tile), lambda i: (0, i)),
        compiler_params=pltpu.CompilerParams(
            dimension_semantics=("parallel",)),
    )
    return jax.jit(call)


def _one_hot_pallas(codes: np.ndarray, *, tile: int = _TILE_MAX) -> jnp.ndarray:
    """codes: host int8 [L] -> device float32 [4, L]."""
    L = int(codes.shape[0])
    L_pad = _bucket_len(L)
    tile = min(tile, L_pad)
    # Pad with code 4 ('N') so padded lanes encode to all-zero columns.
    codes_pad = np.full((1, L_pad), _PAD_CODE, dtype=np.int8)
    codes_pad[0, :L] = codes
    out = _build_call(L_pad, tile)(jnp.asarray(codes_pad))
    return out[:, :L]


class Seq2Tensor:
    """JAX/Pallas port of autosome Seq2Tensor (forward only)."""

    def __call__(self, seq: str) -> jnp.ndarray:
        return _one_hot_pallas(_seq_to_codes(seq))


def _reference(seq: str) -> jnp.ndarray:
    # Pure-JAX reference mirroring the PyTorch forward.
    code = jnp.asarray([n2id(x) for x in seq], dtype=jnp.int32)
    oh = jax.nn.one_hot(code, 5, dtype=jnp.float32)[:, :4]
    return oh.T


if __name__ == "__main__":
    key = jax.random.PRNGKey(0)
    alphabet = "ACGTN"
    model = Seq2Tensor()

    # Primary small test: length-8 sequence drawn with PRNGKey(0).
    idx = jax.random.randint(key, (8,), 0, len(alphabet))
    seq = "".join(alphabet[int(i)] for i in idx)
    out = jax.block_until_ready(model(seq))
    ref = _reference(seq)
    assert out.shape == (4, len(seq)), out.shape
    assert out.dtype == jnp.float32
    assert bool(jnp.all(out == ref))

    # Exercise the multi-tile (grid > 1) path at a small size with tile=128.
    idx2 = jax.random.randint(jax.random.PRNGKey(0), (512,), 0, len(alphabet))
    seq2 = "".join(alphabet[int(i)] for i in idx2)
    out2 = jax.block_until_ready(_one_hot_pallas(_seq_to_codes(seq2), tile=128))
    ref2 = _reference(seq2)
    assert out2.shape == (4, 512)
    assert bool(jnp.all(out2 == ref2))

    print("KERNEL_OK")
</pallas_src>

<mosaic_0001>
module attributes {stable_mosaic.version = 11 : i64} {
  func.func @_seq2tensor_kernel(%arg0: i32, %arg1: memref<1x128xi8, #tpu.memory_space<vmem>>, %arg2: memref<4x128xf32, #tpu.memory_space<vmem>>) attributes {dimension_semantics = [#tpu.dimension_semantics<parallel>], iteration_bounds = array<i64: 1>, scalar_prefetch = 0 : i64, scratch_operands = 0 : i64, tpu.core_type = #tpu.core_type<tc>, window_params = [{transform_indices = @transform_0, window_bounds = array<i64: 1, 128>}, {transform_indices = @transform_1, window_bounds = array<i64: 4, 128>}]} {
    %c0 = arith.constant 0 : index
    %c0_0 = arith.constant 0 : index
    %0 = vector.load %arg1[%c0, %c0_0] : memref<1x128xi8, #tpu.memory_space<vmem>>, vector<1x128xi8>
    %1 = arith.extsi %0 : vector<1x128xi8> to vector<1x128xi32>
    %2 = tpu.iota {dimensions = array<i32: 0>} : vector<4x1xi32>
    %3 = vector.broadcast %2 : vector<4x1xi32> to vector<4x128xi32>
    %4 = vector.broadcast %1 : vector<1x128xi32> to vector<4x128xi32>
    %5 = arith.cmpi eq, %3, %4 : vector<4x128xi32>
    %6 = arith.extui %5 : vector<4x128xi1> to vector<4x128xi32>
    %7 = arith.sitofp %6 : vector<4x128xi32> to vector<4x128xf32>
    %c0_1 = arith.constant 0 : index
    %c0_2 = arith.constant 0 : index
    %8 = vector.load %arg2[%c0_1, %c0_2] : memref<4x128xf32, #tpu.memory_space<vmem>>, vector<4x128xf32>
    tpu.vector_store %arg2[%c0_1, %c0_2], %7 {strides = array<i32>} : memref<4x128xf32, #tpu.memory_space<vmem>>, vector<4x128xf32>,
    return
  }
  func.func @transform_0(%arg0: i32) -> (i32, i32) {
    %c0_i32 = arith.constant 0 : i32
    %c0_i32_0 = arith.constant 0 : i32
    return %c0_i32, %arg0 : i32, i32
  }
  func.func @transform_1(%arg0: i32) -> (i32, i32) {
    %c0_i32 = arith.constant 0 : i32
    %c0_i32_0 = arith.constant 0 : i32
    return %c0_i32, %arg0 : i32, i32
  }
}

</mosaic_0001>

<llo_original>
// kernel: tpu_custom_call.1
$region0: #{tpu_custom_call.1}
  #allocation0 [shape = 'u32[]', space=smem, size = 0x4, offset = 0x4, fixed_abs, tag = 'smem constant byte address 0x4 - core index']
  #allocation1 [shape = 'u32[144,128]{1,0:T(1,128)}', space=vmem, size = 0x12000, scoped, tag = 'internal scratch']
  %s0 = inlined_call_operand.hbm [shape: s8[1,128], index: 0, kind: input, shape index: {}]
  %s1 = inlined_call_operand.hbm [shape: f32[4,128], index: 1, kind: output, shape index: {}]
  %s2 = sld [smem:[#allocation0]]
  $region18: #{tpu_custom_call.1} parent=0
    _
  %s4 = ssub.s32 1, %s2
  %s5 = scalar_select 0, %s4, %s2
  $region1: #{tpu_custom_call.1} parent=0
    #allocation2 [shape = 'u8[512]{0}', space=vmem, size = 0x400, scoped, tag = 'input window, operand 0, single buffered']
    #allocation3 [shape = 's32[1]{0}', space=sflag, size = 0x4, scoped, tag = 'scoped memory for tpu_custom_call.1']
    #allocation4 [shape = 's32[1]{0}', space=sflag, size = 0x4, scoped, tag = 'scoped memory for tpu_custom_call.1']
    #allocation5 [shape = 'u8[2048]{0}', space=vmem, size = 0x800, scoped, tag = 'output window, operand 0, single buffered']
    %6 = vsyncpa [#allocation3], 0
    %7 = vsyncpa [#allocation4], 0
    // Predicated region
    $region2: #{tpu_custom_call.1} parent=1 // pred_check
      _
    $region3: #{tpu_custom_call.1} parent=1 // pred_check_branch
      %9 = sbr.rel (0) target = $region5
    $region4: #{tpu_custom_call.1} parent=1 // pred_region
      %s11 = ssub.s32 16, 16
      %12 = vsyncadd [#allocation3], %s11
      %s14 = sshll.u32 [#allocation2], 4
      %s15 = int_to_ptr.vmem [resolvable:$true] %s14
      %17 = dma.hbm_to_vmem [thread:$0]  %s0, 16, %s15, [#allocation3]
    $region5: #{tpu_custom_call.1} parent=1 // pred_fallthru
      _
    // Predicated region
    $region6: #{tpu_custom_call.1} parent=1 // pred_check
      _
    $region7: #{tpu_custom_call.1} parent=1 // pred_check_branch
      %19 = sbr.rel (0) target = $region9
    $region8: #{tpu_custom_call.1} parent=1 // pred_region
      %20 = dma.done [#allocation3], 16
    $region9: #{tpu_custom_call.1} parent=1 // pred_fallthru
      _
    %v21 = vld [vmem:[#allocation2] sm:$0x1]
    %v22 = vunpack.c.0.s8 %v21
    %v23 = vlaneseq
    %v24 = vshrl.u32 %v23, 7
    %v25 = vlaneseq
    %v26 = vshrl.u32 %v25, 7
    %v27 = vsub.s32 0, %v26
    %v28 = vrot.slane %v22, %v27
    %vm29 = vcmp.eq.s32.totalorder %v24, %v28
    %v30 = vsel %vm29, 1, 0
    %v31 = vcvt.s32.f32 %v30
    %32 = vst [vmem:[#allocation5] sm:$0xf] %v31
    // Predicated region
    $region10: #{tpu_custom_call.1} parent=1 // pred_check
      _
    $region11: #{tpu_custom_call.1} parent=1 // pred_check_branch
      %34 = sbr.rel (0) target = $region13
    $region12: #{tpu_custom_call.1} parent=1 // pred_region
      %s36 = ssub.s32 64, 64
      %37 = vsyncadd [#allocation4], %s36
      %s39 = sshll.u32 [#allocation5], 4
      %s40 = int_to_ptr.vmem [resolvable:$true] %s39
      %42 = dma.vmem_to_hbm [thread:$0]  %s40, 64, %s1, [#allocation4]
    $region13: #{tpu_custom_call.1} parent=1 // pred_fallthru
      _
    // Predicated region
    $region14: #{tpu_custom_call.1} parent=1 // pred_check
      _
    $region15: #{tpu_custom_call.1} parent=1 // pred_check_branch
      %44 = sbr.rel (0) target = $region17
    $region16: #{tpu_custom_call.1} parent=1 // pred_region
      %45 = dma.done [#allocation4], 64
    $region17: #{tpu_custom_call.1} parent=1 // pred_fallthru
      _
    %46 = vsyncpa [#allocation3], 1
    %47 = vsyncpa [#allocation4], 1

</llo_original>
